<compile_context>
chip_gen: v7x
topology: tpu7x:2x2x1
jax: 0.10.0
libtpu: 0.0.40
codegen_flags: <defaults>
</compile_context>

<pallas_src>
import functools
import math

import jax
import jax.numpy as jnp
from jax.experimental import pallas as pl
from jax.experimental.pallas import tpu as pltpu


# ----------------------------- VMEM budgeting -----------------------------

def _vmem_capacity_bytes():
    try:
        return int(pltpu.get_tpu_info().vmem_capacity_bytes)
    except Exception:
        return 64 * 1024 * 1024          # conservative (v7x-sized) fallback

_VMEM_CAP = _vmem_capacity_bytes()
_VMEM_LIMIT = min(int(_VMEM_CAP * 0.75), 100 * 1024 * 1024)   # scoped limit for pallas_calls
_VMEM_BUDGET = int(_VMEM_CAP * 0.35)                          # target pipelined working set


def _pick_time_tile(T_out, per_t_bytes):
    """Largest lane-dense time tile (multiple of 128) dividing T_out within the VMEM budget."""
    target = max(128, _VMEM_BUDGET // max(per_t_bytes, 1))
    if T_out <= target:
        return T_out, 1
    t = min((target // 128) * 128, (T_out // 128) * 128)
    while t >= 128:
        if T_out % t == 0:
            return t, T_out // t
        t -= 128
    # Fallback: whole axis in one block (only hit for awkward T_out; fine at these sizes).
    return T_out, 1


def _pick_gru_chunk(T, B, H):
    """Largest chunk dividing T whose double-buffered gi/out working set fits the budget."""
    per_t = 2 * 2 * B * (3 * H + H) * 2          # 2 dirs x 2 buffers x (gi + out) bf16
    target = max(1, min(T, _VMEM_BUDGET // max(per_t, 1)))
    if T <= target:
        return T, 1
    for c in range(target, 0, -1):
        if T % c == 0:
            return c, T // c
    return T, 1


# ----------------------------- Pallas kernels -----------------------------

def _prelu_conv_kernel(alpha_ref, x_ref, *refs, dilation, B, fuse_residual, has_halo):
    """PReLU -> stride-1 Conv1d on one time tile with B folded into the matmul N dim.

    alpha_ref: SMEM (1,) PReLU slope.
    x_ref:     (C_in, Tt*B) body tile (time-major, batch minor; includes the halo when n_t == 1).
    halo_ref:  (1, C_in, D*B) halo columns (only when has_halo).
    w_ref:     (K, C_out, C_in) bf16 per-tap weights (VMEM-resident across the grid).
    b_ref:     (C_out, 1) f32 bias.
    res_ref:   (C_out, Tt*B) residual (only when fuse_residual).
    o_ref:     (C_out, Tt*B) output tile.
    """
    i = 0
    if has_halo:
        halo_ref = refs[i]; i += 1
    w_ref = refs[i]; i += 1
    b_ref = refs[i]; i += 1
    if fuse_residual:
        res_ref = refs[i]; i += 1
    o_ref = refs[i]

    K = w_ref.shape[0]
    N = o_ref.shape[-1]                              # Tt * B
    alpha = alpha_ref[0]
    inv_sqrt2 = 1.0 / math.sqrt(2.0)

    xb = x_ref[...]
    if has_halo:
        xb = jnp.concatenate([xb, halo_ref[0]], axis=-1)
    # PReLU once per input element, then bf16 operands for the MXU (f32 accumulation).
    xb = jnp.where(xb >= 0, xb, alpha * xb).astype(jnp.bfloat16)

    acc = jnp.dot(w_ref[0], xb[:, 0:N], preferred_element_type=jnp.float32)
    for k in range(1, K):                            # K accumulated taps (no im2col)
        off = k * dilation * B                       # time offset in the flattened (T*B) axis
        acc = acc + jnp.dot(w_ref[k], xb[:, off:off + N],
                            preferred_element_type=jnp.float32)
    acc = acc + b_ref[...]
    if fuse_residual:                                # fused (x + conv)/sqrt(2), f32 epilogue
        acc = (acc + res_ref[...].astype(jnp.float32)) * inv_sqrt2
    o_ref[...] = acc.astype(o_ref.dtype)


def _bigru_layer_kernel(gi_f_ref, gi_b_ref, whh_f_ref, whh_b_ref, bhh_f_ref, bhh_b_ref,
                        of_ref, ob_ref, hf_ref, hb_ref):
    """Bidirectional GRU recurrence over one time chunk (input projection already applied).

    gi_*_ref: (Tc, B, 3H) bf16 precomputed x@Wih+bih, gates (r|z|n) at lane offsets 0/H/2H.
    whh_*:    (H, 3H) bf16 fused hidden weights (gh = h @ W).
    bhh_*:    (1, 3H) f32 fused hidden biases.
    of/ob:    (Tc, B, H) per-direction outputs (bf16).
    hf/hb:    (B, H) f32 VMEM scratch hidden state, persists across chunks.
    """
    Tc = gi_f_ref.shape[0]
    H = hf_ref.shape[-1]

    @pl.when(pl.program_id(0) == 0)
    def _():
        hf_ref[...] = jnp.zeros_like(hf_ref)
        hb_ref[...] = jnp.zeros_like(hb_ref)

    # Loop-invariant weight/bias loads hoisted out of the recurrence.
    wf = whh_f_ref[...]
    wb = whh_b_ref[...]
    bf = bhh_f_ref[...]
    bb = bhh_b_ref[...]

    def cell(gi, h, w, bias):
        # Single fused (B,H)@(H,3H) matmul per step per direction.
        gh = jnp.dot(h.astype(jnp.bfloat16), w, preferred_element_type=jnp.float32) + bias
        r = jax.nn.sigmoid(gi[:, 0:H] + gh[:, 0:H])
        z = jax.nn.sigmoid(gi[:, H:2 * H] + gh[:, H:2 * H])
        n = jnp.tanh(gi[:, 2 * H:] + r * gh[:, 2 * H:])   # bias_hn inside the r-multiply (PyTorch)
        return (1.0 - z) * n + z * h

    def step(t, carry):
        # forward direction (global time ascends)
        gi = gi_f_ref[pl.ds(t, 1)][0].astype(jnp.float32)          # (B, 3H)
        h_new = cell(gi, hf_ref[...], wf, bf)
        hf_ref[...] = h_new
        of_ref[pl.ds(t, 1)] = h_new[None].astype(of_ref.dtype)

        # backward direction: local index reversed; the chunk index map is also reversed, so the
        # global time processed descends as the loop advances.
        tb = Tc - 1 - t
        gib = gi_b_ref[pl.ds(tb, 1)][0].astype(jnp.float32)
        hb_new = cell(gib, hb_ref[...], wb, bb)
        hb_ref[...] = hb_new
        ob_ref[pl.ds(tb, 1)] = hb_new[None].astype(ob_ref.dtype)
        return carry

    jax.lax.fori_loop(0, Tc, step, 0, unroll=2)


# ----------------------------- conv wrappers -----------------------------

def prelu_conv_s1(x, p, *, dilation=1, padding=0, residual=None, out_dtype=jnp.bfloat16):
    """PReLU -> Conv1d (stride 1, canonical weights (K, C_out, C_in)) in Pallas.

    x: (C_in, T, B) -> (C_out, T_out, B).  If residual is not None the kernel epilogue computes
    (residual + conv)/sqrt(2) instead of returning the raw conv output.
    """
    w_k, bias, alpha = p["w_k"], p["b"], p["alpha"]
    K, C_out, C_in = w_k.shape
    _, T, B = x.shape
    if padding > 0:
        x = jnp.pad(x, ((0, 0), (padding, padding), (0, 0)))
    Tp = T + 2 * padding
    D = dilation * (K - 1)
    T_out = Tp - D

    fuse_residual = residual is not None
    per_t = 2 * B * (C_in * 2 + C_out * 2 * (2 if fuse_residual else 1))   # double-buffered bytes
    Tt, n_t = _pick_time_tile(T_out, per_t)
    has_halo = (n_t > 1) and (D > 0)

    x2 = x.reshape(C_in, Tp * B)                     # free reshape (row-major)

    in_specs = [pl.BlockSpec(memory_space=pltpu.MemorySpace.SMEM)]         # alpha scalar
    args = [alpha]
    if n_t == 1:
        in_specs.append(pl.BlockSpec((C_in, Tp * B), lambda t: (0, 0)))    # whole (halo-incl.) tile
        args.append(x2)
    else:
        # Non-overlapping body blocks straight from HBM (no duplicated halo tiles) ...
        in_specs.append(pl.BlockSpec((C_in, Tt * B), lambda t: (0, t)))
        args.append(x2)
        if has_halo:
            # ... plus a tiny gathered side array carrying only the D-sample halo per tile.
            starts = (jnp.arange(n_t) + 1) * Tt
            idx = starts[:, None] + jnp.arange(D)[None, :]                 # (n_t, D) time indices
            halo = x[:, idx, :]                                            # (C_in, n_t, D, B)
            halo = jnp.transpose(halo, (1, 0, 2, 3)).reshape(n_t, C_in, D * B)
            in_specs.append(pl.BlockSpec((1, C_in, D * B), lambda t: (t, 0, 0)))
            args.append(halo)

    in_specs += [
        pl.BlockSpec((K, C_out, C_in), lambda t: (0, 0, 0)),               # weights (resident)
        pl.BlockSpec((C_out, 1), lambda t: (0, 0)),                        # bias (resident)
    ]
    args += [w_k, bias]
    if fuse_residual:
        in_specs.append(pl.BlockSpec((C_out, Tt * B), lambda t: (0, t)))
        args.append(residual.reshape(C_out, T_out * B))

    kernel = functools.partial(_prelu_conv_kernel, dilation=dilation, B=B,
                               fuse_residual=fuse_residual, has_halo=has_halo)

    out2 = pl.pallas_call(
        kernel,
        out_shape=jax.ShapeDtypeStruct((C_out, T_out * B), out_dtype),
        grid=(n_t,),
        in_specs=in_specs,
        out_specs=pl.BlockSpec((C_out, Tt * B), lambda t: (0, t)),
        compiler_params=pltpu.CompilerParams(
            dimension_semantics=("parallel",),
            vmem_limit_bytes=_VMEM_LIMIT),
    )(*args)
    return out2.reshape(C_out, T_out, B)


def _blockify_time(x, r, pad):
    """(C, T, B) -> (C*r, nb, B): group time into r-element blocks (channel index = c*r + p)."""
    C, T, B = x.shape
    if pad > 0:
        x = jnp.pad(x, ((0, 0), (pad, pad), (0, 0)))
    Tp = T + 2 * pad
    nb = Tp // r
    xb = x[:, :nb * r, :].reshape(C, nb, r, B)
    xb = jnp.transpose(xb, (0, 2, 1, 3)).reshape(C * r, nb, B)
    return xb


def down_conv(x, p):
    """PReLU -> Conv1d(kernel=2r, stride=r, pad=r//2, channels x2) as a stride-1 kernel-2 conv
    over r-element time blocks (no strided access, no data duplication)."""
    r = p["r"]
    xb = _blockify_time(x, r, r // 2)
    return prelu_conv_s1(xb, p, dilation=1, padding=0)


def st_conv(x, p):
    """PReLU -> Conv1d(kernel=r, stride=r, pad=0) as a pointwise conv over r-element blocks."""
    r = p["r"]
    xb = _blockify_time(x, r, 0)
    return prelu_conv_s1(xb, p, dilation=1, padding=0)


def conv_block(x, p, mode=None, out_dtype=jnp.bfloat16):
    """Reconstructed UNIVERSE ConvBlock. Returns (out, pre-block residual, None)."""
    res = x
    if mode == "down":
        x = down_conv(x, p["down"])
    h = prelu_conv_s1(x, p["conv1"], dilation=1, padding=1)
    # second conv with (x + conv2(prelu(h))) / sqrt(2) fused into the kernel epilogue
    out = prelu_conv_s1(h, p["conv2"], dilation=2, padding=2, residual=x, out_dtype=out_dtype)
    return out, res, None


# ----------------------------- GRU wrappers -----------------------------

def bigru_layer(x_tbi, layer_p):
    """One bidirectional GRU layer. x_tbi: (T, B, I) -> (T, B, 2H) bf16."""
    T, B, I = x_tbi.shape
    H = layer_p["fwd"]["whh"].shape[0]

    # Time-parallel input projection hoisted out of the recurrence: one flat (T*B, I) @ (I, 3H)
    # bf16 matmul per direction, producing gi directly in the (T, B, 3H) kernel layout.
    x_flat = x_tbi.reshape(T * B, I).astype(jnp.bfloat16)

    def proj(p):
        gi = jnp.dot(x_flat, p["wih"], preferred_element_type=jnp.float32)
        gi = gi + p["bih"][None, :]
        return gi.astype(jnp.bfloat16).reshape(T, B, 3 * H)

    gi_f = proj(layer_p["fwd"])
    gi_b = proj(layer_p["bwd"])

    Tc, nc = _pick_gru_chunk(T, B, H)

    out_f, out_b = pl.pallas_call(
        _bigru_layer_kernel,
        out_shape=(jax.ShapeDtypeStruct((T, B, H), jnp.bfloat16),
                   jax.ShapeDtypeStruct((T, B, H), jnp.bfloat16)),
        grid=(nc,),
        in_specs=[
            pl.BlockSpec((Tc, B, 3 * H), lambda c: (c, 0, 0)),             # fwd chunks ascend
            pl.BlockSpec((Tc, B, 3 * H), lambda c: (nc - 1 - c, 0, 0)),    # bwd chunks descend
            pl.BlockSpec((H, 3 * H), lambda c: (0, 0)),
            pl.BlockSpec((H, 3 * H), lambda c: (0, 0)),
            pl.BlockSpec((1, 3 * H), lambda c: (0, 0)),
            pl.BlockSpec((1, 3 * H), lambda c: (0, 0)),
        ],
        out_specs=(pl.BlockSpec((Tc, B, H), lambda c: (c, 0, 0)),
                   pl.BlockSpec((Tc, B, H), lambda c: (nc - 1 - c, 0, 0))),
        scratch_shapes=[pltpu.VMEM((B, H), jnp.float32),      # h fwd (persists across chunks)
                        pltpu.VMEM((B, H), jnp.float32)],     # h bwd
        compiler_params=pltpu.CompilerParams(
            dimension_semantics=("arbitrary",),
            vmem_limit_bytes=_VMEM_LIMIT),
    )(gi_f, gi_b,
      layer_p["fwd"]["whh"], layer_p["bwd"]["whh"],
      layer_p["fwd"]["bhh"], layer_p["bwd"]["bhh"])

    return jnp.concatenate([out_f, out_b], axis=-1)           # (T, B, 2H)


def bigru(x_tbc, gru_params):
    """2-layer bidirectional GRU, time-major input (T, B, C) -> (T, B, 2H)."""
    h = x_tbc
    for layer_p in gru_params:
        h = bigru_layer(h, layer_p)
    return h


# ----------------------------- parameter init -----------------------------

def _init_conv_raw(key, c_in, c_out, K):
    k1, k2 = jax.random.split(key)
    s = 1.0 / math.sqrt(c_in * K)
    w = jax.random.uniform(k1, (c_out, c_in, K), minval=-s, maxval=s, dtype=jnp.float32)
    b = jax.random.uniform(k2, (c_out, 1), minval=-s, maxval=s, dtype=jnp.float32)
    alpha = jnp.full((1,), 0.25, jnp.float32)          # PyTorch PReLU default (scalar)
    return w, b, alpha


def _init_k_conv(key, c_in, c_out, K):
    """Stride-1 conv used inside ConvBlock; canonical weight layout (K, C_out, C_in) bf16."""
    w, b, alpha = _init_conv_raw(key, c_in, c_out, K)
    return dict(w_k=jnp.transpose(w, (2, 0, 1)).astype(jnp.bfloat16), b=b, alpha=alpha)


def _init_down_conv(key, c_in, r):
    """kernel=2r, stride=r, pad=r//2, channels x2 -> canonical K'=2 conv over r-blocks."""
    c_out = 2 * c_in
    w, b, alpha = _init_conv_raw(key, c_in, c_out, 2 * r)
    wq = w.reshape(c_out, c_in, 2, r)                           # [o, c, q, p], k = q*r + p
    wq = jnp.transpose(wq, (2, 0, 1, 3)).reshape(2, c_out, c_in * r)
    return dict(w_k=wq.astype(jnp.bfloat16), b=b, alpha=alpha, r=r)


def _init_st_conv(key, c_in, c_out, r):
    """kernel=r, stride=r, pad=0 -> canonical K'=1 (pointwise) conv over r-blocks."""
    w, b, alpha = _init_conv_raw(key, c_in, c_out, r)
    w1 = w.reshape(c_out, c_in * r)[None]                       # (1, C_out, C_in*r)
    return dict(w_k=w1.astype(jnp.bfloat16), b=b, alpha=alpha, r=r)


def _init_conv_block(kit, c_in, mode=None, r=1):
    p = {}
    c = c_in
    if mode == "down":
        p["down"] = _init_down_conv(next(kit), c_in, r)
        c = 2 * c_in
    p["conv1"] = _init_k_conv(next(kit), c, c, 3)
    p["conv2"] = _init_k_conv(next(kit), c, c, 3)
    return p


def _init_gru_dir(key, I, H):
    """Fused-gate GRU weights: wih (I,3H), whh (H,3H) bf16; biases f32. Gate order (r|z|n)."""
    ks = jax.random.split(key, 4)
    s = 1.0 / math.sqrt(H)
    wih = jax.random.uniform(ks[0], (I, 3 * H), minval=-s, maxval=s, dtype=jnp.float32)
    whh = jax.random.uniform(ks[1], (H, 3 * H), minval=-s, maxval=s, dtype=jnp.float32)
    bih = jax.random.uniform(ks[2], (3 * H,), minval=-s, maxval=s, dtype=jnp.float32)
    bhh = jax.random.uniform(ks[3], (3 * H,), minval=-s, maxval=s, dtype=jnp.float32)
    return dict(wih=wih.astype(jnp.bfloat16), whh=whh.astype(jnp.bfloat16),
                bih=bih, bhh=bhh.reshape(1, 3 * H))


def init_conditioner_encoder(key, ds_factors, input_channels):
    c = input_channels
    oc = c * 2 ** len(ds_factors)
    H = oc // 2

    # rates, exactly as in make_st_convs
    rates = [ds_factors[-1]]
    for r in ds_factors[-2::-1]:
        rates.append(rates[-1] * r)
    rates = rates[::-1]
    num_layers = len(ds_factors) - 1

    kit = iter(jax.random.split(key, 8 * len(ds_factors) + 16))

    ds_params = [_init_conv_block(kit, c * 2 ** i, mode="down", r=r)
                 for i, r in enumerate(ds_factors)]
    st_params = []
    for i in range(len(ds_factors)):
        if i >= num_layers:
            st_params.append(None)
        else:
            st_params.append(_init_st_conv(next(kit), c * 2 ** i, oc, rates[i]))

    cb1 = _init_conv_block(kit, oc)
    cb2 = _init_conv_block(kit, oc)

    gru = []
    I = oc
    for _ in range(2):
        gru.append(dict(fwd=_init_gru_dir(next(kit), I, H),
                        bwd=_init_gru_dir(next(kit), I, H)))
        I = 2 * H

    return dict(ds=ds_params, st=st_params, cb1=cb1, cb2=cb2, gru=gru)


# ----------------------------- forward -----------------------------

def conditioner_encoder_forward(params, x, x_mel):
    """x: (B, C_in, T), x_mel: (B, oc, T_final) -> ((B, oc, T_final), lengths[::-1])."""
    h = jnp.transpose(x, (1, 2, 0))                    # (B, C, T) -> (C, T, B)
    outputs, lengths = [], []
    for i in range(len(params["ds"])):
        lengths.append(h.shape[1])
        h_new, res, _ = conv_block(h, params["ds"][i], mode="down")
        if params["st"][i] is not None:
            outputs.append(st_conv(res, params["st"][i]))
        h = h_new
    outputs.append(h)

    norm_factor = 1.0 / math.sqrt(len(outputs) + 1)
    out = jnp.transpose(x_mel, (1, 2, 0)).astype(jnp.float32)   # (oc, T_f, B)
    for o in outputs:
        out = out + o.astype(jnp.float32)
    out = out * norm_factor

    out, *_ = conv_block(out, params["cb1"])
    g = jnp.transpose(out, (1, 2, 0))                  # (C, T, B) -> (T, B, C) time-major
    g = bigru(g, params["gru"])                        # (T, B, oc)
    out = jnp.transpose(g, (2, 0, 1))                  # -> (oc, T, B)
    out, *_ = conv_block(out, params["cb2"], out_dtype=jnp.float32)
    out = jnp.transpose(out, (2, 0, 1))                # (C, T, B) -> (B, C, T)
    return out, lengths[::-1]


# ----------------------------- main -----------------------------

if __name__ == "__main__":
    key = jax.random.PRNGKey(0)
    k_par, k_x, k_mel = jax.random.split(key, 3)

    ds_factors = [2, 4]
    input_channels = 4
    B, T = 2, 64
    oc = input_channels * 2 ** len(ds_factors)         # 16
    T_final = T // (ds_factors[0] * ds_factors[1])     # 8

    params = init_conditioner_encoder(k_par, ds_factors, input_channels)
    x = jax.random.normal(k_x, (B, input_channels, T), dtype=jnp.float32)
    x_mel = jax.random.normal(k_mel, (B, oc, T_final), dtype=jnp.float32)

    out, lengths = conditioner_encoder_forward(params, x, x_mel)
    out = jax.block_until_ready(out)

    assert out.shape == (B, oc, T_final), out.shape
    assert out.dtype == jnp.float32, out.dtype
    assert lengths == [T // ds_factors[0], T]
    assert bool(jnp.isfinite(out).all())
    print("KERNEL_OK")
</pallas_src>

<mosaic_0001>
module attributes {stable_mosaic.version = 11 : i64} {
  func.func @_prelu_conv_kernel(%arg0: i32, %arg1: memref<1xf32, #tpu.memory_space<smem>>, %arg2: memref<8x66xf32, #tpu.memory_space<vmem>>, %arg3: memref<2x8x8xbf16, #tpu.memory_space<vmem>>, %arg4: memref<8x1xf32, #tpu.memory_space<vmem>>, %arg5: memref<8x64xbf16, #tpu.memory_space<vmem>>) attributes {dimension_semantics = [#tpu.dimension_semantics<parallel>], iteration_bounds = array<i64: 1>, scalar_prefetch = 0 : i64, scratch_operands = 0 : i64, tpu.core_type = #tpu.core_type<tc>, window_params = [{transform_indices = @transform_0, window_bounds = array<i64: 1>}, {pipeline_mode = #tpu.pipeline_mode<synchronous>, transform_indices = @transform_1, window_bounds = array<i64: 8, 66>}, {pipeline_mode = #tpu.pipeline_mode<synchronous>, transform_indices = @transform_2, window_bounds = array<i64: 2, 8, 8>}, {pipeline_mode = #tpu.pipeline_mode<synchronous>, transform_indices = @transform_3, window_bounds = array<i64: 8, 1>}, {transform_indices = @transform_4, window_bounds = array<i64: 8, 64>}]} {
    %c0 = arith.constant 0 : index
    %0 = memref.load %arg1[%c0] : memref<1xf32, #tpu.memory_space<smem>>
    %c0_0 = arith.constant 0 : index
    %c0_1 = arith.constant 0 : index
    %1 = vector.load %arg2[%c0_0, %c0_1] : memref<8x66xf32, #tpu.memory_space<vmem>>, vector<8x66xf32>
    %cst = arith.constant 0.000000e+00 : f32
    %2 = vector.broadcast %cst : f32 to vector<8x66xf32>
    %3 = arith.cmpf oge, %1, %2 : vector<8x66xf32>
    %4 = vector.broadcast %0 : f32 to vector<8x66xf32>
    %5 = arith.mulf %4, %1 : vector<8x66xf32>
    %6 = arith.select %3, %1, %5 : vector<8x66xi1>, vector<8x66xf32>
    %7 = arith.truncf %6 : vector<8x66xf32> to vector<8x66xbf16>
    %c0_2 = arith.constant 0 : index
    %c0_3 = arith.constant 0 : index
    %c0_4 = arith.constant 0 : index
    %8 = vector.load %arg3[%c0_2, %c0_3, %c0_4] : memref<2x8x8xbf16, #tpu.memory_space<vmem>>, vector<1x8x8xbf16>
    %9 = vector.shape_cast %8 : vector<1x8x8xbf16> to vector<8x8xbf16>
    %10 = vector.extract_strided_slice %7 {offsets = [0, 0], sizes = [8, 64], strides = [1, 1]} : vector<8x66xbf16> to vector<8x64xbf16>
    %cst_5 = arith.constant dense<0.000000e+00> : vector<8x64xf32>
    %11 = tpu.matmul %9, %10, %cst_5 {dimension_numbers = #tpu.dot_dimension_numbers<[1], [0], [0], [1], [0, 0, 1, 1], [], []>} : vector<8x8xbf16>, vector<8x64xbf16>, vector<8x64xf32> -> vector<8x64xf32>
    %c1 = arith.constant 1 : index
    %c0_6 = arith.constant 0 : index
    %c0_7 = arith.constant 0 : index
    %12 = vector.load %arg3[%c1, %c0_6, %c0_7] : memref<2x8x8xbf16, #tpu.memory_space<vmem>>, vector<1x8x8xbf16>
    %13 = vector.shape_cast %12 : vector<1x8x8xbf16> to vector<8x8xbf16>
    %14 = vector.extract_strided_slice %7 {offsets = [0, 2], sizes = [8, 64], strides = [1, 1]} : vector<8x66xbf16> to vector<8x64xbf16>
    %cst_8 = arith.constant dense<0.000000e+00> : vector<8x64xf32>
    %15 = tpu.matmul %13, %14, %cst_8 {dimension_numbers = #tpu.dot_dimension_numbers<[1], [0], [0], [1], [0, 0, 1, 1], [], []>} : vector<8x8xbf16>, vector<8x64xbf16>, vector<8x64xf32> -> vector<8x64xf32>
    %16 = arith.addf %11, %15 : vector<8x64xf32>
    %c0_9 = arith.constant 0 : index
    %c0_10 = arith.constant 0 : index
    %17 = vector.load %arg4[%c0_9, %c0_10] : memref<8x1xf32, #tpu.memory_space<vmem>>, vector<8x1xf32>
    %18 = vector.broadcast %17 : vector<8x1xf32> to vector<8x64xf32>
    %19 = arith.addf %16, %18 : vector<8x64xf32>
    %20 = arith.truncf %19 : vector<8x64xf32> to vector<8x64xbf16>
    %c0_11 = arith.constant 0 : index
    %c0_12 = arith.constant 0 : index
    %21 = vector.load %arg5[%c0_11, %c0_12] : memref<8x64xbf16, #tpu.memory_space<vmem>>, vector<8x64xbf16>
    tpu.vector_store %arg5[%c0_11, %c0_12], %20 {strides = array<i32>} : memref<8x64xbf16, #tpu.memory_space<vmem>>, vector<8x64xbf16>,
    return
  }
  func.func @transform_0(%arg0: i32) -> i32 {
    %c0_i32 = arith.constant 0 : i32
    %c0_i32_0 = arith.constant 0 : i32
    return %c0_i32 : i32
  }
  func.func @transform_1(%arg0: i32) -> (i32, i32) {
    %c0_i32 = arith.constant 0 : i32
    %c0_i32_0 = arith.constant 0 : i32
    %c0_i32_1 = arith.constant 0 : i32
    return %c0_i32, %c0_i32_0 : i32, i32
  }
  func.func @transform_2(%arg0: i32) -> (i32, i32, i32) {
    %c0_i32 = arith.constant 0 : i32
    %c0_i32_0 = arith.constant 0 : i32
    %c0_i32_1 = arith.constant 0 : i32
    %c0_i32_2 = arith.constant 0 : i32
    return %c0_i32, %c0_i32_0, %c0_i32_1 : i32, i32, i32
  }
  func.func @transform_3(%arg0: i32) -> (i32, i32) {
    %c0_i32 = arith.constant 0 : i32
    %c0_i32_0 = arith.constant 0 : i32
    %c0_i32_1 = arith.constant 0 : i32
    return %c0_i32, %c0_i32_0 : i32, i32
  }
  func.func @transform_4(%arg0: i32) -> (i32, i32) {
    %c0_i32 = arith.constant 0 : i32
    %c0_i32_0 = arith.constant 0 : i32
    return %c0_i32, %arg0 : i32, i32
  }
}

</mosaic_0001>

<llo_original>
// kernel: tpu_custom_call.1
$region0: #{tpu_custom_call.1}
  #allocation0 [shape = 'u32[]', space=smem, size = 0x4, offset = 0x4, fixed_abs, tag = 'smem constant byte address 0x4 - core index']
  #allocation1 [shape = 'u32[144,128]{1,0:T(1,128)}', space=vmem, size = 0x12000, scoped, tag = 'internal scratch']
  #allocation2 [shape = 'f32[1]{0:T(128)S(6)}', space=smem, size = 0x200, scoped, tag = 'scoped memory for tpu_custom_call.1']
  %s0 = inlined_call_operand.<no memory space> [shape: f32[1], index: 0, kind: input, shape index: {}]
  %s1 = inlined_call_operand.vmem [shape: f32[8,66], index: 1, kind: input, shape index: {}]
  %s2 = inlined_call_operand.vmem [shape: bf16[2,8,8], index: 2, kind: input, shape index: {}]
  %s3 = inlined_call_operand.vmem [shape: f32[8,1], index: 3, kind: input, shape index: {}]
  %s4 = inlined_call_operand.hbm [shape: bf16[8,64], index: 4, kind: output, shape index: {}]
  %s5 = sld [smem:[#allocation0]]
  $region26: #{tpu_custom_call.1} parent=0
    _
  %s7 = ssub.s32 1, %s5
  %s8 = scalar_select 0, %s7, %s5
  %9 = sst [smem:[#allocation2]] %s0
  $region1: #{tpu_custom_call.1} parent=0
    #allocation3 [shape = 'u8[2048]{0}', space=vmem, size = 0x800, scoped, tag = 'output window, operand 0, single buffered']
    #allocation4 [shape = 's32[1]{0}', space=sflag, size = 0x4, scoped, tag = 'scoped memory for tpu_custom_call.1']
    %10 = vsyncpa [#allocation4], 0
    // Predicated region
    $region2: #{tpu_custom_call.1} parent=1 // pred_check
      _
    $region3: #{tpu_custom_call.1} parent=1 // pred_check_branch
      %12 = sbr.rel (0) target = $region5
    $region4: #{tpu_custom_call.1} parent=1 // pred_region
      _
    $region5: #{tpu_custom_call.1} parent=1 // pred_fallthru
      _
    // Predicated region
    $region6: #{tpu_custom_call.1} parent=1 // pred_check
      _
    $region7: #{tpu_custom_call.1} parent=1 // pred_check_branch
      %14 = sbr.rel (0) target = $region9
    $region8: #{tpu_custom_call.1} parent=1 // pred_region
      _
    $region9: #{tpu_custom_call.1} parent=1 // pred_fallthru
      _
    // Predicated region
    $region10: #{tpu_custom_call.1} parent=1 // pred_check
      _
    $region11: #{tpu_custom_call.1} parent=1 // pred_check_branch
      %16 = sbr.rel (0) target = $region13
    $region12: #{tpu_custom_call.1} parent=1 // pred_region
      _
    $region13: #{tpu_custom_call.1} parent=1 // pred_fallthru
      _
    // Predicated region
    $region14: #{tpu_custom_call.1} parent=1 // pred_check
      _
    $region15: #{tpu_custom_call.1} parent=1 // pred_check_branch
      %18 = sbr.rel (0) target = $region17
    $region16: #{tpu_custom_call.1} parent=1 // pred_region
      _
    $region17: #{tpu_custom_call.1} parent=1 // pred_fallthru
      _
    %s20 = sld [smem:[#allocation2]]
    %v21 = vld [vmem:[%s1] sm:$0xff]
    %vm22 = vcmp.ge.f32.partialorder %v21, 0.0
    %v23 = vstv %s20
    %v24 = vmul.f32 %v23, %v21
    %v25 = vsel %vm22, %v21, %v24
    %v26 = vpack.c.bf16 %v25, %v25
    %v27 = vld [vmem:[%s2] sm:$0xf]
    %s28 = scalar_lea.vmem %s2, 4
    %v29 = vld [vmem:[%s28] sm:$0xf]
    %31 = vrot.lane.b32.xlu0 %v26, 126
    %v32 = vpop.permute.xlu0 %31
    %vm33 = vcmask 64512
    %v35 = vsel %vm33, %v29, 0
    %vm37 = vcmask 1043456
    %v39 = vsel %vm37, %v32, 0
    %41 = vmatprep.subr.bf16.mxu0 0
    %42 = vmatpush1.bf16.msra.mxu0 %v39
    %43 = vmatprep.subr.bf16.mxu0 0
    %44 = vmatpush1.bf16.msra.mxu0 0
    %45 = vmatprep.subr.bf16.mxu0 0
    %46 = vmatpush1.bf16.msra.mxu0 0
    %47 = vmatprep.subr.bf16.mxu0 0
    %48 = vmatpush1.bf16.msra.mxu0 0
    %49 = vmatprep.subr.bf16.mxu0 0
    %50 = vmatpush1.bf16.msra.mxu0 0
    %51 = vmatprep.subr.bf16.mxu0 0
    %52 = vmatpush1.bf16.msra.mxu0 0
    %53 = vmatprep.subr.bf16.mxu0 0
    %54 = vmatpush1.bf16.msra.mxu0 0
    %55 = vmatprep.subr.bf16.mxu0 0
    %56 = vmatpush1.bf16.msra.mxu0 0
    %57 = vmatprep.subr.bf16.mxu0 0
    %58 = vmatpush1.bf16.msra.mxu0 0
    %59 = vmatprep.subr.bf16.mxu0 0
    %60 = vmatpush1.bf16.msra.mxu0 0
    %61 = vmatprep.subr.bf16.mxu0 0
    %62 = vmatpush1.bf16.msra.mxu0 0
    %63 = vmatprep.subr.bf16.mxu0 0
    %64 = vmatpush1.bf16.msra.mxu0 0
    %65 = vmatprep.subr.bf16.mxu0 0
    %66 = vmatpush1.bf16.msra.mxu0 0
    %67 = vmatprep.subr.bf16.mxu0 0
    %68 = vmatpush1.bf16.msra.mxu0 0
    %69 = vmatprep.subr.bf16.mxu0 0
    %70 = vmatpush1.bf16.msra.mxu0 0
    %71 = vmatprep.subr.bf16.mxu0 0
    %72 = vmatpush1.bf16.msra.mxu0 0
    %73 = vmatprep.mubr.bf16.mxu0 0
    %74 = vmatmul.mubr.bf16.gmra.mrb[0].mxu0 %v35
    %v75 = vpop.f32.mrb[0].mxu0
    %v76 = vadd.f32 0.0, %v75
    %v77 = vpop.f32.mrb[0].mxu0
    %v78 = vpop.f32.mrb[0].mxu0
    %v79 = vpop.f32.mrb[0].mxu0
    %80 = vdwg.mxu0
    %v82 = vsel %vm33, %v27, 0
    %v85 = vsel %vm37, %v26, 0
    %87 = vmatprep.subr.bf16.mxu0 0
    %88 = vmatpush1.bf16.msra.mxu0 %v85
    %89 = vmatprep.subr.bf16.mxu0 0
    %90 = vmatpush1.bf16.msra.mxu0 0
    %91 = vmatprep.subr.bf16.mxu0 0
    %92 = vmatpush1.bf16.msra.mxu0 0
    %93 = vmatprep.subr.bf16.mxu0 0
    %94 = vmatpush1.bf16.msra.mxu0 0
    %95 = vmatprep.subr.bf16.mxu0 0
    %96 = vmatpush1.bf16.msra.mxu0 0
    %97 = vmatprep.subr.bf16.mxu0 0
    %98 = vmatpush1.bf16.msra.mxu0 0
    %99 = vmatprep.subr.bf16.mxu0 0
    %100 = vmatpush1.bf16.msra.mxu0 0
    %101 = vmatprep.subr.bf16.mxu0 0
    %102 = vmatpush1.bf16.msra.mxu0 0
    %103 = vmatprep.subr.bf16.mxu0 0
    %104 = vmatpush1.bf16.msra.mxu0 0
    %105 = vmatprep.subr.bf16.mxu0 0
    %106 = vmatpush1.bf16.msra.mxu0 0
    %107 = vmatprep.subr.bf16.mxu0 0
    %108 = vmatpush1.bf16.msra.mxu0 0
    %109 = vmatprep.subr.bf16.mxu0 0
    %110 = vmatpush1.bf16.msra.mxu0 0
    %111 = vmatprep.subr.bf16.mxu0 0
    %112 = vmatpush1.bf16.msra.mxu0 0
    %113 = vmatprep.subr.bf16.mxu0 0
    %114 = vmatpush1.bf16.msra.mxu0 0
    %115 = vmatprep.subr.bf16.mxu0 0
    %116 = vmatpush1.bf16.msra.mxu0 0
    %117 = vmatprep.subr.bf16.mxu0 0
    %118 = vmatpush1.bf16.msra.mxu0 0
    %119 = vmatprep.mubr.bf16.mxu0 0
    %120 = vmatmul.mubr.bf16.gmra.mrb[0].mxu0 %v82
    %v121 = vpop.f32.mrb[0].mxu0
    %v122 = vadd.f32 %v76, %v121
    %v123 = vpop.f32.mrb[0].mxu0
    %v124 = vpop.f32.mrb[0].mxu0
    %v125 = vpop.f32.mrb[0].mxu0
    %126 = vdwg.mxu0
    %v127 = vld [vmem:[%s3] sm:$0xff]
    %129 = vset.pattern.permute.xlu0 0
    %130 = vperm.xlu0 %129, %v127
    %v131 = vpop.permute.xlu0 %130
    %v133 = vadd.f32 %v122, %v131
    %v134 = vpack.c.bf16 %v133, %v133
    %vm135 = vcmask 519168
    %136 = vst.msk [vmem:[#allocation3] sm:$0xf] %vm135, %v134
    // Predicated region
    $region18: #{tpu_custom_call.1} parent=1 // pred_check
      _
    $region19: #{tpu_custom_call.1} parent=1 // pred_check_branch
      %138 = sbr.rel (0) target = $region21
    $region20: #{tpu_custom_call.1} parent=1 // pred_region
      %s140 = ssub.s32 64, 64
      %141 = vsyncadd [#allocation4], %s140
      %s143 = sshll.u32 [#allocation3], 4
      %s144 = int_to_ptr.vmem [resolvable:$true] %s143
      %146 = dma.vmem_to_hbm [thread:$0]  %s144, 64, %s4, [#allocation4]
    $region21: #{tpu_custom_call.1} parent=1 // pred_fallthru
      _
    // Predicated region
    $region22: #{tpu_custom_call.1} parent=1 // pred_check
      _
    $region23: #{tpu_custom_call.1} parent=1 // pred_check_branch
      %148 = sbr.rel (0) target = $region25
    $region24: #{tpu_custom_call.1} parent=1 // pred_region
      %149 = dma.done [#allocation4], 64
    $region25: #{tpu_custom_call.1} parent=1 // pred_fallthru
      _
    %150 = vsyncpa [#allocation4], 1

</llo_original>
